<compile_context>
chip_gen: v7x
topology: tpu7x:2x2x1
jax: 0.10.0
libtpu: 0.0.40
codegen_flags: <defaults>
</compile_context>

<pallas_src>
import functools

import jax
import jax.numpy as jnp
from jax.experimental import pallas as pl
from jax.experimental.pallas import tpu as pltpu

_H = 256  # hidden width of fc1 / fc2


def _round_up(x, m):
    return (x + m - 1) // m * m


def _q_kernel(s_ref, a_ref, w1s_ref, w1a_ref, b1_ref, w2_ref, b2_ref,
              w3_ref, b3_ref, o_ref):
    # fc1 as split-K: concat(s, a) @ w1 == s @ w1_s + a @ w1_a.
    h1 = jnp.dot(s_ref[...], w1s_ref[...], preferred_element_type=jnp.float32)
    h1 = h1 + jnp.dot(a_ref[...], w1a_ref[...],
                      preferred_element_type=jnp.float32)
    h1 = jnp.maximum(h1 + b1_ref[...], 0.0).astype(jnp.bfloat16)

    # fc2
    h2 = jnp.dot(h1, w2_ref[...], preferred_element_type=jnp.float32) + b2_ref[...]
    h2 = jnp.maximum(h2, 0.0)

    # fc3 (256 -> 1): VPU mul + lane reduce (avoids an N=1 MXU matmul).
    w3 = w3_ref[...].astype(jnp.float32)              # (1, 256), broadcasts over rows
    out = jnp.sum(h2 * w3, axis=-1, keepdims=True) + b3_ref[0, 0]
    o_ref[...] = out.astype(o_ref.dtype)


@functools.partial(jax.jit, static_argnames=("state_dim", "action_dim", "tb"))
def q_forward(s, a, params, *, state_dim, action_dim, tb=512):
    """Pallas forward pass of the Q module.

    s: any shape reshapable to (-1, state_dim)
    a: any shape reshapable to (-1, action_dim)
    params: dict with
        w1_s (state_dim, 256) bf16, w1_a (action_dim, 256) bf16, b1 (1, 256) f32,
        w2   (256, 256)       bf16, b2 (1, 256) f32,
        w3   (1, 256)         bf16, b3 (1, 1)   f32
    returns: (batch, 1) float32
    """
    s = s.reshape(-1, state_dim)
    a = a.reshape(-1, action_dim)
    batch = s.shape[0]

    # Row tile: multiple of 8 sublanes, at most `tb`; pad batch to a multiple
    # of the tile so the last grid step never runs out of range.
    tile = min(tb, _round_up(batch, 8))
    padded = _round_up(batch, tile)
    if padded != batch:
        s = jnp.pad(s, ((0, padded - batch), (0, 0)))
        a = jnp.pad(a, ((0, padded - batch), (0, 0)))

    s = s.astype(jnp.bfloat16)
    a = a.astype(jnp.bfloat16)

    w1_s, w1_a, b1 = params["w1_s"], params["w1_a"], params["b1"]
    w2, b2 = params["w2"], params["b2"]
    w3, b3 = params["w3"], params["b3"]

    resident = lambda arr: pl.BlockSpec(arr.shape, lambda i: (0,) * arr.ndim)

    out = pl.pallas_call(
        _q_kernel,
        out_shape=jax.ShapeDtypeStruct((padded, 1), jnp.float32),
        grid=(padded // tile,),
        in_specs=[
            pl.BlockSpec((tile, state_dim), lambda i: (i, 0)),   # s tile
            pl.BlockSpec((tile, action_dim), lambda i: (i, 0)),  # a tile
            resident(w1_s),
            resident(w1_a),
            resident(b1),
            resident(w2),
            resident(b2),
            resident(w3),
            pl.BlockSpec(memory_space=pltpu.MemorySpace.SMEM),   # b3 scalar
        ],
        out_specs=pl.BlockSpec((tile, 1), lambda i: (i, 0)),
        compiler_params=pltpu.CompilerParams(
            dimension_semantics=("parallel",)),
    )(s, a, w1_s, w1_a, b1, w2, b2, w3, b3)

    return out[:batch]


def init_params(key, state_dim, action_dim):
    """Init mimicking nn.Linear's U(-1/sqrt(fan_in), 1/sqrt(fan_in)).

    Weights stored as [in, out] (transpose of PyTorch layout) so the kernel
    computes x @ W + b directly; matmul weights are cast to bf16.
    """
    def linear(key, fan_in, fan_out):
        kw, kb = jax.random.split(key)
        bound = 1.0 / jnp.sqrt(fan_in)
        w = jax.random.uniform(kw, (fan_in, fan_out), jnp.float32, -bound, bound)
        b = jax.random.uniform(kb, (1, fan_out), jnp.float32, -bound, bound)
        return w, b

    k1, k2, k3 = jax.random.split(key, 3)
    w1, b1 = linear(k1, state_dim + action_dim, _H)
    w2, b2 = linear(k2, _H, _H)
    w3, b3 = linear(k3, _H, 1)

    return dict(
        w1_s=w1[:state_dim].astype(jnp.bfloat16),
        w1_a=w1[state_dim:].astype(jnp.bfloat16),
        b1=b1,
        w2=w2.astype(jnp.bfloat16),
        b2=b2,
        w3=w3.T.astype(jnp.bfloat16),   # stored as (1, 256) row
        b3=b3,                          # (1, 1) f32 scalar (SMEM)
    )


def q_forward_ref(s, a, params, *, state_dim, action_dim):
    """Pure-JAX reference mirroring the kernel's bf16-in / f32-accumulate math."""
    s = s.reshape(-1, state_dim).astype(jnp.bfloat16)
    a = a.reshape(-1, action_dim).astype(jnp.bfloat16)
    h1 = jnp.dot(s, params["w1_s"], preferred_element_type=jnp.float32)
    h1 = h1 + jnp.dot(a, params["w1_a"], preferred_element_type=jnp.float32)
    h1 = jnp.maximum(h1 + params["b1"], 0.0).astype(jnp.bfloat16)
    h2 = jnp.dot(h1, params["w2"], preferred_element_type=jnp.float32) + params["b2"]
    h2 = jnp.maximum(h2, 0.0)
    w3 = params["w3"].astype(jnp.float32)
    return jnp.sum(h2 * w3, axis=-1, keepdims=True) + params["b3"][0, 0]


if __name__ == "__main__":
    state_dim, action_dim = 16, 4

    key = jax.random.PRNGKey(0)
    kp, ks, ka = jax.random.split(key, 3)
    params = init_params(kp, state_dim, action_dim)

    ok = True
    for batch in (8, 37):  # 37 exercises the padded-remainder path
        kss, kaa = jax.random.split(jax.random.fold_in(ks, batch))
        s = jax.random.normal(kss, (batch, state_dim), jnp.float32)
        a = jax.random.normal(kaa, (batch, action_dim), jnp.float32)

        out = q_forward(s, a, params, state_dim=state_dim, action_dim=action_dim)
        out = jax.block_until_ready(out)

        ref = q_forward_ref(s, a, params, state_dim=state_dim,
                            action_dim=action_dim)
        ok &= out.shape == (batch, 1)
        ok &= bool(jnp.allclose(out, ref, atol=2e-3, rtol=2e-3))

    assert ok
    print("KERNEL_OK")
</pallas_src>

<mosaic_0001>
module attributes {stable_mosaic.version = 11 : i64} {
  func.func @_q_kernel(%arg0: i32, %arg1: memref<8x16xbf16, #tpu.memory_space<vmem>>, %arg2: memref<8x4xbf16, #tpu.memory_space<vmem>>, %arg3: memref<16x256xbf16, #tpu.memory_space<vmem>>, %arg4: memref<4x256xbf16, #tpu.memory_space<vmem>>, %arg5: memref<1x256xf32, #tpu.memory_space<vmem>>, %arg6: memref<256x256xbf16, #tpu.memory_space<vmem>>, %arg7: memref<1x256xf32, #tpu.memory_space<vmem>>, %arg8: memref<1x256xbf16, #tpu.memory_space<vmem>>, %arg9: memref<1x1xf32, #tpu.memory_space<smem>>, %arg10: memref<8x1xf32, #tpu.memory_space<vmem>>) attributes {dimension_semantics = [#tpu.dimension_semantics<parallel>], iteration_bounds = array<i64: 1>, scalar_prefetch = 0 : i64, scratch_operands = 0 : i64, tpu.core_type = #tpu.core_type<tc>, window_params = [{transform_indices = @transform_0, window_bounds = array<i64: 8, 16>}, {transform_indices = @transform_1, window_bounds = array<i64: 8, 4>}, {pipeline_mode = #tpu.pipeline_mode<synchronous>, transform_indices = @transform_2, window_bounds = array<i64: 16, 256>}, {pipeline_mode = #tpu.pipeline_mode<synchronous>, transform_indices = @transform_3, window_bounds = array<i64: 4, 256>}, {pipeline_mode = #tpu.pipeline_mode<synchronous>, transform_indices = @transform_4, window_bounds = array<i64: 1, 256>}, {pipeline_mode = #tpu.pipeline_mode<synchronous>, transform_indices = @transform_5, window_bounds = array<i64: 256, 256>}, {pipeline_mode = #tpu.pipeline_mode<synchronous>, transform_indices = @transform_6, window_bounds = array<i64: 1, 256>}, {pipeline_mode = #tpu.pipeline_mode<synchronous>, transform_indices = @transform_7, window_bounds = array<i64: 1, 256>}, {transform_indices = @transform_8, window_bounds = array<i64: 1, 1>}, {transform_indices = @transform_9, window_bounds = array<i64: 8, 1>}]} {
    %c0 = arith.constant 0 : index
    %c0_0 = arith.constant 0 : index
    %0 = vector.load %arg1[%c0, %c0_0] : memref<8x16xbf16, #tpu.memory_space<vmem>>, vector<8x16xbf16>
    %c0_1 = arith.constant 0 : index
    %c0_2 = arith.constant 0 : index
    %1 = vector.load %arg3[%c0_1, %c0_2] : memref<16x256xbf16, #tpu.memory_space<vmem>>, vector<16x256xbf16>
    %cst = arith.constant dense<0.000000e+00> : vector<8x256xf32>
    %2 = tpu.matmul %0, %1, %cst {dimension_numbers = #tpu.dot_dimension_numbers<[1], [0], [0], [1], [0, 0, 1, 1], [], []>} : vector<8x16xbf16>, vector<16x256xbf16>, vector<8x256xf32> -> vector<8x256xf32>
    %c0_3 = arith.constant 0 : index
    %c0_4 = arith.constant 0 : index
    %3 = vector.load %arg2[%c0_3, %c0_4] : memref<8x4xbf16, #tpu.memory_space<vmem>>, vector<8x4xbf16>
    %c0_5 = arith.constant 0 : index
    %c0_6 = arith.constant 0 : index
    %4 = vector.load %arg4[%c0_5, %c0_6] : memref<4x256xbf16, #tpu.memory_space<vmem>>, vector<4x256xbf16>
    %cst_7 = arith.constant dense<0.000000e+00> : vector<8x256xf32>
    %5 = tpu.matmul %3, %4, %cst_7 {dimension_numbers = #tpu.dot_dimension_numbers<[1], [0], [0], [1], [0, 0, 1, 1], [], []>} : vector<8x4xbf16>, vector<4x256xbf16>, vector<8x256xf32> -> vector<8x256xf32>
    %6 = arith.addf %2, %5 : vector<8x256xf32>
    %c0_8 = arith.constant 0 : index
    %c0_9 = arith.constant 0 : index
    %7 = vector.load %arg5[%c0_8, %c0_9] : memref<1x256xf32, #tpu.memory_space<vmem>>, vector<1x256xf32>
    %8 = vector.broadcast %7 : vector<1x256xf32> to vector<8x256xf32>
    %9 = arith.addf %6, %8 : vector<8x256xf32>
    %cst_10 = arith.constant 0.000000e+00 : f32
    %10 = vector.broadcast %cst_10 : f32 to vector<8x256xf32>
    %11 = arith.maximumf %9, %10 : vector<8x256xf32>
    %12 = arith.truncf %11 : vector<8x256xf32> to vector<8x256xbf16>
    %c0_11 = arith.constant 0 : index
    %c0_12 = arith.constant 0 : index
    %13 = vector.load %arg6[%c0_11, %c0_12] : memref<256x256xbf16, #tpu.memory_space<vmem>>, vector<256x256xbf16>
    %cst_13 = arith.constant dense<0.000000e+00> : vector<8x256xf32>
    %14 = tpu.matmul %12, %13, %cst_13 {dimension_numbers = #tpu.dot_dimension_numbers<[1], [0], [0], [1], [0, 0, 1, 1], [], []>} : vector<8x256xbf16>, vector<256x256xbf16>, vector<8x256xf32> -> vector<8x256xf32>
    %c0_14 = arith.constant 0 : index
    %c0_15 = arith.constant 0 : index
    %15 = vector.load %arg7[%c0_14, %c0_15] : memref<1x256xf32, #tpu.memory_space<vmem>>, vector<1x256xf32>
    %16 = vector.broadcast %15 : vector<1x256xf32> to vector<8x256xf32>
    %17 = arith.addf %14, %16 : vector<8x256xf32>
    %cst_16 = arith.constant 0.000000e+00 : f32
    %18 = vector.broadcast %cst_16 : f32 to vector<8x256xf32>
    %19 = arith.maximumf %17, %18 : vector<8x256xf32>
    %c0_17 = arith.constant 0 : index
    %c0_18 = arith.constant 0 : index
    %20 = vector.load %arg8[%c0_17, %c0_18] : memref<1x256xbf16, #tpu.memory_space<vmem>>, vector<1x256xbf16>
    %21 = arith.extf %20 : vector<1x256xbf16> to vector<1x256xf32>
    %22 = vector.broadcast %21 : vector<1x256xf32> to vector<8x256xf32>
    %23 = arith.mulf %19, %22 : vector<8x256xf32>
    %cst_19 = arith.constant dense<0.000000e+00> : vector<8xf32>
    %24 = vector.multi_reduction <add>, %23, %cst_19 [1] : vector<8x256xf32> to vector<8xf32>
    %25 = vector.shape_cast %24 : vector<8xf32> to vector<8x1xf32>
    %c0_20 = arith.constant 0 : index
    %c0_21 = arith.constant 0 : index
    %26 = memref.load %arg9[%c0_20, %c0_21] : memref<1x1xf32, #tpu.memory_space<smem>>
    %27 = vector.broadcast %26 : f32 to vector<8x1xf32>
    %28 = arith.addf %25, %27 : vector<8x1xf32>
    %c0_22 = arith.constant 0 : index
    %c0_23 = arith.constant 0 : index
    %29 = vector.load %arg10[%c0_22, %c0_23] : memref<8x1xf32, #tpu.memory_space<vmem>>, vector<8x1xf32>
    tpu.vector_store %arg10[%c0_22, %c0_23], %28 {strides = array<i32>} : memref<8x1xf32, #tpu.memory_space<vmem>>, vector<8x1xf32>,
    return
  }
  func.func @transform_0(%arg0: i32) -> (i32, i32) {
    %c0_i32 = arith.constant 0 : i32
    %c0_i32_0 = arith.constant 0 : i32
    return %arg0, %c0_i32 : i32, i32
  }
  func.func @transform_1(%arg0: i32) -> (i32, i32) {
    %c0_i32 = arith.constant 0 : i32
    %c0_i32_0 = arith.constant 0 : i32
    return %arg0, %c0_i32 : i32, i32
  }
  func.func @transform_2(%arg0: i32) -> (i32, i32) {
    %c0_i32 = arith.constant 0 : i32
    %c0_i32_0 = arith.constant 0 : i32
    %c0_i32_1 = arith.constant 0 : i32
    return %c0_i32, %c0_i32_0 : i32, i32
  }
  func.func @transform_3(%arg0: i32) -> (i32, i32) {
    %c0_i32 = arith.constant 0 : i32
    %c0_i32_0 = arith.constant 0 : i32
    %c0_i32_1 = arith.constant 0 : i32
    return %c0_i32, %c0_i32_0 : i32, i32
  }
  func.func @transform_4(%arg0: i32) -> (i32, i32) {
    %c0_i32 = arith.constant 0 : i32
    %c0_i32_0 = arith.constant 0 : i32
    %c0_i32_1 = arith.constant 0 : i32
    return %c0_i32, %c0_i32_0 : i32, i32
  }
  func.func @transform_5(%arg0: i32) -> (i32, i32) {
    %c0_i32 = arith.constant 0 : i32
    %c0_i32_0 = arith.constant 0 : i32
    %c0_i32_1 = arith.constant 0 : i32
    return %c0_i32, %c0_i32_0 : i32, i32
  }
  func.func @transform_6(%arg0: i32) -> (i32, i32) {
    %c0_i32 = arith.constant 0 : i32
    %c0_i32_0 = arith.constant 0 : i32
    %c0_i32_1 = arith.constant 0 : i32
    return %c0_i32, %c0_i32_0 : i32, i32
  }
  func.func @transform_7(%arg0: i32) -> (i32, i32) {
    %c0_i32 = arith.constant 0 : i32
    %c0_i32_0 = arith.constant 0 : i32
    %c0_i32_1 = arith.constant 0 : i32
    return %c0_i32, %c0_i32_0 : i32, i32
  }
  func.func @transform_8(%arg0: i32) -> (i32, i32) {
    %c0_i32 = arith.constant 0 : i32
    %c0_i32_0 = arith.constant 0 : i32
    %c0_i32_1 = arith.constant 0 : i32
    return %c0_i32, %c0_i32_0 : i32, i32
  }
  func.func @transform_9(%arg0: i32) -> (i32, i32) {
    %c0_i32 = arith.constant 0 : i32
    %c0_i32_0 = arith.constant 0 : i32
    return %arg0, %c0_i32 : i32, i32
  }
}

</mosaic_0001>

<llo_original>
// kernel: q_forward.1
$region0: #{q_forward.1}
  #allocation0 [shape = 'u32[]', space=smem, size = 0x4, offset = 0x4, fixed_abs, tag = 'smem constant byte address 0x4 - core index']
  #allocation1 [shape = 'u32[144,128]{1,0:T(1,128)}', space=vmem, size = 0x12000, scoped, tag = 'internal scratch']
  #allocation2 [shape = 'f32[1,1]{1,0:T(1,128)S(6)}', space=smem, size = 0x200, scoped, tag = 'scoped memory for q_forward.1']
  %s0 = inlined_call_operand.vmem [shape: bf16[8,16], index: 0, kind: input, shape index: {}]
  %s1 = inlined_call_operand.vmem [shape: bf16[8,4], index: 1, kind: input, shape index: {}]
  %s2 = inlined_call_operand.vmem [shape: bf16[16,256], index: 2, kind: input, shape index: {}]
  %s3 = inlined_call_operand.vmem [shape: bf16[4,256], index: 3, kind: input, shape index: {}]
  %s4 = inlined_call_operand.vmem [shape: f32[1,256], index: 4, kind: input, shape index: {}]
  %s5 = inlined_call_operand.hbm [shape: bf16[256,256], index: 5, kind: input, shape index: {}]
  %s6 = inlined_call_operand.vmem [shape: f32[1,256], index: 6, kind: input, shape index: {}]
  %s7 = inlined_call_operand.vmem [shape: bf16[1,256], index: 7, kind: input, shape index: {}]
  %s8 = inlined_call_operand.<no memory space> [shape: f32[1,1], index: 8, kind: input, shape index: {}]
  %s9 = inlined_call_operand.vmem [shape: f32[8,1], index: 9, kind: output, shape index: {}]
  %s10 = sld [smem:[#allocation0]]
  $region50: #{q_forward.1} parent=0
    _
  %s12 = ssub.s32 1, %s10
  %s13 = scalar_select 0, %s12, %s10
  %14 = sst [smem:[#allocation2]] %s8
  $region1: #{q_forward.1} parent=0
    #allocation3 [shape = 'u8[131072]{0}', space=vmem, size = 0x20000, scoped, tag = 'input window, operand 5, single buffered']
    #allocation4 [shape = 's32[1]{0}', space=sflag, size = 0x4, scoped, tag = 'scoped memory for q_forward.1']
    %15 = vsyncpa [#allocation4], 0
    // Predicated region
    $region2: #{q_forward.1} parent=1 // pred_check
      _
    $region3: #{q_forward.1} parent=1 // pred_check_branch
      %17 = sbr.rel (0) target = $region5
    $region4: #{q_forward.1} parent=1 // pred_region
      _
    $region5: #{q_forward.1} parent=1 // pred_fallthru
      _
    // Predicated region
    $region6: #{q_forward.1} parent=1 // pred_check
      _
    $region7: #{q_forward.1} parent=1 // pred_check_branch
      %19 = sbr.rel (0) target = $region9
    $region8: #{q_forward.1} parent=1 // pred_region
      _
    $region9: #{q_forward.1} parent=1 // pred_fallthru
      _
    // Predicated region
    $region10: #{q_forward.1} parent=1 // pred_check
      _
    $region11: #{q_forward.1} parent=1 // pred_check_branch
      %21 = sbr.rel (0) target = $region13
    $region12: #{q_forward.1} parent=1 // pred_region
      _
    $region13: #{q_forward.1} parent=1 // pred_fallthru
      _
    // Predicated region
    $region14: #{q_forward.1} parent=1 // pred_check
      _
    $region15: #{q_forward.1} parent=1 // pred_check_branch
      %23 = sbr.rel (0) target = $region17
    $region16: #{q_forward.1} parent=1 // pred_region
      _
    $region17: #{q_forward.1} parent=1 // pred_fallthru
      _
    // Predicated region
    $region18: #{q_forward.1} parent=1 // pred_check
      _
    $region19: #{q_forward.1} parent=1 // pred_check_branch
      %25 = sbr.rel (0) target = $region21
    $region20: #{q_forward.1} parent=1 // pred_region
      _
    $region21: #{q_forward.1} parent=1 // pred_fallthru
      _
    // Predicated region
    $region22: #{q_forward.1} parent=1 // pred_check
      _
    $region23: #{q_forward.1} parent=1 // pred_check_branch
      %27 = sbr.rel (0) target = $region25
    $region24: #{q_forward.1} parent=1 // pred_region
      %s29 = ssub.s32 4096, 4096
      %30 = vsyncadd [#allocation4], %s29
      %s31 = sshll.u32 [#allocation3], 4
      %s32 = int_to_ptr.vmem [resolvable:$true] %s31
      %37 = dma.hbm_to_vmem [thread:$0]  %s5, 4096, %s32, [#allocation4], 128, 128, 8
    $region25: #{q_forward.1} parent=1 // pred_fallthru
      _
    // Predicated region
    $region26: #{q_forward.1} parent=1 // pred_check
      _
    $region27: #{q_forward.1} parent=1 // pred_check_branch
      %39 = sbr.rel (0) target = $region29
    $region28: #{q_forward.1} parent=1 // pred_region
      _
    $region29: #{q_forward.1} parent=1 // pred_fallthru
      _
    // Predicated region
    $region30: #{q_forward.1} parent=1 // pred_check
      _
    $region31: #{q_forward.1} parent=1 // pred_check_branch
      %41 = sbr.rel (0) target = $region33
    $region32: #{q_forward.1} parent=1 // pred_region
      _
    $region33: #{q_forward.1} parent=1 // pred_fallthru
      _
    // Predicated region
    $region34: #{q_forward.1} parent=1 // pred_check
      _
    $region35: #{q_forward.1} parent=1 // pred_check_branch
      %43 = sbr.rel (0) target = $region37
    $region36: #{q_forward.1} parent=1 // pred_region
      _
    $region37: #{q_forward.1} parent=1 // pred_fallthru
      _
    // Predicated region
    $region38: #{q_forward.1} parent=1 // pred_check
      _
    $region39: #{q_forward.1} parent=1 // pred_check_branch
      %45 = sbr.rel (0) target = $region41
    $region40: #{q_forward.1} parent=1 // pred_region
      %46 = dma.done [#allocation4], 4096
    $region41: #{q_forward.1} parent=1 // pred_fallthru
      _
    %v48 = vld [vmem:[%s0] sm:$0xf]
    %v49 = vld [vmem:[%s2] sm:$0xff]
    %v50 = vld [vmem:[%s2 + $0x8] sm:$0xff]
    %v51 = vld [vmem:[%s1] sm:$0xf]
    %v52 = vld [vmem:[%s3] sm:$0xf]
    %v55 = vunpack.c.l.s4 1983009808
    %v56 = vunpack.c.0.s8 %v55
    %v57 = vlaneseq
    %v58 = vshrl.u32 %v57, 7
    %v59 = vsub.s32 %v56, %v58
    %v60 = vrot.slane %v52, %v59
    %v61 = vcombine.high %v60, %v60
    %vm62 = vcmask 31744
    %v64 = vsel %vm62, %v51, 0
    %vm66 = vcmask 1041408
    %v68 = vsel %vm66, %v60, 0
    %v71 = vsel %vm66, %v61, 0
    %73 = vmatprep.subr.bf16.mxu0 %v71
    %74 = vmatpush1.bf16.msra.mxu0 %v68
    %75 = vmatprep.subr.bf16.mxu0 0
    %76 = vmatpush1.bf16.msra.mxu0 0
    %77 = vmatprep.subr.bf16.mxu0 0
    %78 = vmatpush1.bf16.msra.mxu0 0
    %79 = vmatprep.subr.bf16.mxu0 0
    %80 = vmatpush1.bf16.msra.mxu0 0
    %81 = vmatprep.subr.bf16.mxu0 0
    %82 = vmatpush1.bf16.msra.mxu0 0
    %83 = vmatprep.subr.bf16.mxu0 0
    %84 = vmatpush1.bf16.msra.mxu0 0
    %85 = vmatprep.subr.bf16.mxu0 0
    %86 = vmatpush1.bf16.msra.mxu0 0
    %87 = vmatprep.subr.bf16.mxu0 0
    %88 = vmatpush1.bf16.msra.mxu0 0
    %89 = vmatprep.subr.bf16.mxu0 0
    %90 = vmatpush1.bf16.msra.mxu0 0
    %91 = vmatprep.subr.bf16.mxu0 0
    %92 = vmatpush1.bf16.msra.mxu0 0
    %93 = vmatprep.subr.bf16.mxu0 0
    %94 = vmatpush1.bf16.msra.mxu0 0
    %95 = vmatprep.subr.bf16.mxu0 0
    %96 = vmatpush1.bf16.msra.mxu0 0
    %97 = vmatprep.subr.bf16.mxu0 0
    %98 = vmatpush1.bf16.msra.mxu0 0
    %99 = vmatprep.subr.bf16.mxu0 0
    %100 = vmatpush1.bf16.msra.mxu0 0
    %101 = vmatprep.subr.bf16.mxu0 0
    %102 = vmatpush1.bf16.msra.mxu0 0
    %103 = vmatprep.subr.bf16.mxu0 0
    %104 = vmatpush1.bf16.msra.mxu0 0
    %105 = vmatprep.mubr.bf16.mxu0 0
    %106 = vmatmul.mubr.bf16.gmra.mrb[0].mxu0 %v64
    %v107 = vpop.f32.mrb[0].mxu0
    %v108 = vadd.f32 0.0, %v107
    %v109 = vpop.f32.mrb[0].mxu0
    %v110 = vadd.f32 0.0, %v109
    %v111 = vpop.f32.mrb[0].mxu0
    %v112 = vpop.f32.mrb[0].mxu0
    %113 = vdwg.mxu0
    %v116 = vunpack.c.l.b16 %v49
    %v117 = vunpack.c.h.b16 %v49
    %v118 = vunpack.c.l.b16 %v50
    %v119 = vunpack.c.h.b16 %v50
    %v120 = vpack.c.b16 %v118, %v116
    %v121 = vpack.c.b16 %v119, %v117
    %vm124 = vcmask 130048
    %v126 = vsel %vm124, %v48, 0
    %128 = vmatprep.subr.bf16.mxu0 %v121
    %129 = vmatpush1.bf16.msra.mxu0 %v120
    %130 = vmatprep.subr.bf16.mxu0 0
    %131 = vmatpush1.bf16.msra.mxu0 0
    %132 = vmatprep.subr.bf16.mxu0 0
    %133 = vmatpush1.bf16.msra.mxu0 0
    %134 = vmatprep.subr.bf16.mxu0 0
    %135 = vmatpush1.bf16.msra.mxu0 0
    %136 = vmatprep.subr.bf16.mxu0 0
    %137 = vmatpush1.bf16.msra.mxu0 0
    %138 = vmatprep.subr.bf16.mxu0 0
    %139 = vmatpush1.bf16.msra.mxu0 0
    %140 = vmatprep.subr.bf16.mxu0 0
    %141 = vmatpush1.bf16.msra.mxu0 0
    %142 = vmatprep.subr.bf16.mxu0 0
    %143 = vmatpush1.bf16.msra.mxu0 0
    %144 = vmatprep.subr.bf16.mxu0 0
    %145 = vmatpush1.bf16.msra.mxu0 0
    %146 = vmatprep.subr.bf16.mxu0 0
    %147 = vmatpush1.bf16.msra.mxu0 0
    %148 = vmatprep.subr.bf16.mxu0 0
    %149 = vmatpush1.bf16.msra.mxu0 0
    %150 = vmatprep.subr.bf16.mxu0 0
    %151 = vmatpush1.bf16.msra.mxu0 0
    %152 = vmatprep.subr.bf16.mxu0 0
    %153 = vmatpush1.bf16.msra.mxu0 0
    %154 = vmatprep.subr.bf16.mxu0 0
    %155 = vmatpush1.bf16.msra.mxu0 0
    %156 = vmatprep.subr.bf16.mxu0 0
    %157 = vmatpush1.bf16.msra.mxu0 0
    %158 = vmatprep.subr.bf16.mxu0 0
    %159 = vmatpush1.bf16.msra.mxu0 0
    %160 = vmatprep.mubr.bf16.mxu0 0
    %161 = vmatmul.mubr.bf16.gmra.mrb[0].mxu0 %v126
    %v162 = vpop.f32.mrb[0].mxu0
    %v163 = vadd.f32 %v108, %v162
    %v164 = vpop.f32.mrb[0].mxu0
    %v165 = vadd.f32 %v110, %v164
    %v166 = vpop.f32.mrb[0].mxu0
    %v167 = vpop.f32.mrb[0].mxu0
    %168 = vdwg.mxu0
    %v169 = vld [vmem:[%s4] sm:$0x3]
    %v171 = vlaneseq
    %v172 = vshrl.u32 %v171, 7
    %v173 = vsub.s32 0, %v172
    %v174 = vrot.slane %v169, %v173
    %v175 = vlaneseq
    %v176 = vshrl.u32 %v175, 7
    %v177 = vsub.s32 1, %v176
    %v178 = vrot.slane %v169, %v177
    %v181 = vadd.f32 %v163, %v174
    %v182 = vadd.f32 %v165, %v178
    %v183 = vmax.f32 %v181, 0.0
    %v184 = vmax.f32 %v182, 0.0
    %v185 = vpack.c.bf16 %v183, %v183
    %v186 = vpack.c.bf16 %v184, %v184
    %v187 = vld [vmem:[#allocation3] sm:$0xff]
    %v188 = vld [vmem:[#allocation3 + $0x8] sm:$0xff]
    %v189 = vld [vmem:[#allocation3 + $0x10] sm:$0xff]
    %v190 = vld [vmem:[#allocation3 + $0x18] sm:$0xff]
    %v191 = vld [vmem:[#allocation3 + $0x20] sm:$0xff]
    %v192 = vld [vmem:[#allocation3 + $0x28] sm:$0xff]
    %v193 = vld [vmem:[#allocation3 + $0x30] sm:$0xff]
    %v194 = vld [vmem:[#allocation3 + $0x38] sm:$0xff]
    %v195 = vld [vmem:[#allocation3 + $0x40] sm:$0xff]
    %v196 = vld [vmem:[#allocation3 + $0x48] sm:$0xff]
    %v197 = vld [vmem:[#allocation3 + $0x50] sm:$0xff]
    %v198 = vld [vmem:[#allocation3 + $0x58] sm:$0xff]
    %v199 = vld [vmem:[#allocation3 + $0x60] sm:$0xff]
    %v200 = vld [vmem:[#allocation3 + $0x68] sm:$0xff]
    %v201 = vld [vmem:[#allocation3 + $0x70] sm:$0xff]
    %v202 = vld [vmem:[#allocation3 + $0x78] sm:$0xff]
    %v203 = vld [vmem:[#allocation3 + $0x80] sm:$0xff]
    %v204 = vld [vmem:[#allocation3 + $0x88] sm:$0xff]
    %v205 = vld [vmem:[#allocation3 + $0x90] sm:$0xff]
    %v206 = vld [vmem:[#allocation3 + $0x98] sm:$0xff]
    %v207 = vld [vmem:[#allocation3 + $0xa0] sm:$0xff]
    %v208 = vld [vmem:[#allocation3 + $0xa8] sm:$0xff]
    %v209 = vld [vmem:[#allocation3 + $0xb0] sm:$0xff]
    %v210 = vld [vmem:[#allocation3 + $0xb8] sm:$0xff]
    %v211 = vld [vmem:[#allocation3 + $0xc0] sm:$0xff]
    %v212 = vld [vmem:[#allocation3 + $0xc8] sm:$0xff]
    %v213 = vld [vmem:[#allocation3 + $0xd0] sm:$0xff]
    %v214 = vld [vmem:[#allocation3 + $0xd8] sm:$0xff]
    %v215 = vld [vmem:[#allocation3 + $0xe0] sm:$0xff]
    %v216 = vld [vmem:[#allocation3 + $0xe8] sm:$0xff]
    %v217 = vld [vmem:[#allocation3 + $0xf0] sm:$0xff]
    %v218 = vld [vmem:[#allocation3 + $0xf8] sm:$0xff]
    %v219 = vld [vmem:[%s6] sm:$0x3]
    %v221 = vlaneseq
    %v222 = vshrl.u32 %v221, 7
    %v223 = vsub.s32 0, %v222
    %v224 = vrot.slane %v219, %v223
    %v225 = vlaneseq
    %v226 = vshrl.u32 %v225, 7
    %v227 = vsub.s32 1, %v226
    %v228 = vrot.slane %v219, %v227
    %v263 = vunpack.c.l.b16 %v187
    %v264 = vunpack.c.h.b16 %v187
    %v265 = vunpack.c.l.b16 %v188
    %v266 = vunpack.c.h.b16 %v188
    %v267 = vunpack.c.l.b16 %v189
    %v268 = vunpack.c.h.b16 %v189
    %v269 = vunpack.c.l.b16 %v190
    %v270 = vunpack.c.h.b16 %v190
    %v271 = vunpack.c.l.b16 %v191
    %v272 = vunpack.c.h.b16 %v191
    %v273 = vunpack.c.l.b16 %v192
    %v274 = vunpack.c.h.b16 %v192
    %v275 = vunpack.c.l.b16 %v193
    %v276 = vunpack.c.h.b16 %v193
    %v277 = vunpack.c.l.b16 %v194
    %v278 = vunpack.c.h.b16 %v194
    %v279 = vunpack.c.l.b16 %v195
    %v280 = vunpack.c.h.b16 %v195
    %v281 = vunpack.c.l.b16 %v196
    %v282 = vunpack.c.h.b16 %v196
    %v283 = vunpack.c.l.b16 %v197
    %v284 = vunpack.c.h.b16 %v197
    %v285 = vunpack.c.l.b16 %v198
    %v286 = vunpack.c.h.b16 %v198
    %v287 = vunpack.c.l.b16 %v199
    %v288 = vunpack.c.h.b16 %v199
    %v289 = vunpack.c.l.b16 %v200
    %v290 = vunpack.c.h.b16 %v200
    %v291 = vunpack.c.l.b16 %v201
    %v292 = vunpack.c.h.b16 %v201
    %v293 = vunpack.c.l.b16 %v202
    %v294 = vunpack.c.h.b16 %v202
    %v295 = vunpack.c.l.b16 %v203
    %v296 = vunpack.c.h.b16 %v203
    %v297 = vunpack.c.l.b16 %v204
    %v298 = vunpack.c.h.b16 %v204
    %v299 = vunpack.c.l.b16 %v205
    %v300 = vunpack.c.h.b16 %v205
    %v301 = vunpack.c.l.b16 %v206
    %v302 = vunpack.c.h.b16 %v206
    %v303 = vunpack.c.l.b16 %v207
    %v304 = vunpack.c.h.b16 %v207
    %v305 = vunpack.c.l.b16 %v208
    %v306 = vunpack.c.h.b16 %v208
    %v307 = vunpack.c.l.b16 %v209
    %v308 = vunpack.c.h.b16 %v209
    %v309 = vunpack.c.l.b16 %v210
    %v310 = vunpack.c.h.b16 %v210
    %v311 = vunpack.c.l.b16 %v211
    %v312 = vunpack.c.h.b16 %v211
    %v313 = vunpack.c.l.b16 %v212
    %v314 = vunpack.c.h.b16 %v212
    %v315 = vunpack.c.l.b16 %v213
    %v316 = vunpack.c.h.b16 %v213
    %v317 = vunpack.c.l.b16 %v214
    %v318 = vunpack.c.h.b16 %v214
    %v319 = vunpack.c.l.b16 %v215
    %v320 = vunpack.c.h.b16 %v215
    %v321 = vunpack.c.l.b16 %v216
    %v322 = vunpack.c.h.b16 %v216
    %v323 = vunpack.c.l.b16 %v217
    %v324 = vunpack.c.h.b16 %v217
    %v325 = vunpack.c.l.b16 %v218
    %v326 = vunpack.c.h.b16 %v218
    %v327 = vpack.c.b16 %v265, %v263
    %v328 = vpack.c.b16 %v266, %v264
    %v329 = vpack.c.b16 %v269, %v267
    %v330 = vpack.c.b16 %v270, %v268
    %v331 = vpack.c.b16 %v273, %v271
    %v332 = vpack.c.b16 %v274, %v272
    %v333 = vpack.c.b16 %v277, %v275
    %v334 = vpack.c.b16 %v278, %v276
    %v335 = vpack.c.b16 %v281, %v279
    %v336 = vpack.c.b16 %v282, %v280
    %v337 = vpack.c.b16 %v285, %v283
    %v338 = vpack.c.b16 %v286, %v284
    %v339 = vpack.c.b16 %v289, %v287
    %v340 = vpack.c.b16 %v290, %v288
    %v341 = vpack.c.b16 %v293, %v291
    %v342 = vpack.c.b16 %v294, %v292
    %v343 = vpack.c.b16 %v297, %v295
    %v344 = vpack.c.b16 %v298, %v296
    %v345 = vpack.c.b16 %v301, %v299
    %v346 = vpack.c.b16 %v302, %v300
    %v347 = vpack.c.b16 %v305, %v303
    %v348 = vpack.c.b16 %v306, %v304
    %v349 = vpack.c.b16 %v309, %v307
    %v350 = vpack.c.b16 %v310, %v308
    %v351 = vpack.c.b16 %v313, %v311
    %v352 = vpack.c.b16 %v314, %v312
    %v353 = vpack.c.b16 %v317, %v315
    %v354 = vpack.c.b16 %v318, %v316
    %v355 = vpack.c.b16 %v321, %v319
    %v356 = vpack.c.b16 %v322, %v320
    %v357 = vpack.c.b16 %v325, %v323
    %v358 = vpack.c.b16 %v326, %v324
    %391 = vmatprep.subr.bf16.mxu0 %v328
    %392 = vmatpush1.bf16.msra.mxu0 %v327
    %393 = vmatprep.subr.bf16.mxu0 %v330
    %394 = vmatpush1.bf16.msra.mxu0 %v329
    %395 = vmatprep.subr.bf16.mxu0 %v332
    %396 = vmatpush1.bf16.msra.mxu0 %v331
    %397 = vmatprep.subr.bf16.mxu0 %v334
    %398 = vmatpush1.bf16.msra.mxu0 %v333
    %399 = vmatprep.subr.bf16.mxu0 %v336
    %400 = vmatpush1.bf16.msra.mxu0 %v335
    %401 = vmatprep.subr.bf16.mxu0 %v338
    %402 = vmatpush1.bf16.msra.mxu0 %v337
    %403 = vmatprep.subr.bf16.mxu0 %v340
    %404 = vmatpush1.bf16.msra.mxu0 %v339
    %405 = vmatprep.subr.bf16.mxu0 %v342
    %406 = vmatpush1.bf16.msra.mxu0 %v341
    %407 = vmatprep.subr.bf16.mxu0 %v344
    %408 = vmatpush1.bf16.msra.mxu0 %v343
    %409 = vmatprep.subr.bf16.mxu0 %v346
    %410 = vmatpush1.bf16.msra.mxu0 %v345
    %411 = vmatprep.subr.bf16.mxu0 %v348
    %412 = vmatpush1.bf16.msra.mxu0 %v347
    %413 = vmatprep.subr.bf16.mxu0 %v350
    %414 = vmatpush1.bf16.msra.mxu0 %v349
    %415 = vmatprep.subr.bf16.mxu0 %v352
    %416 = vmatpush1.bf16.msra.mxu0 %v351
    %417 = vmatprep.subr.bf16.mxu0 %v354
    %418 = vmatpush1.bf16.msra.mxu0 %v353
    %419 = vmatprep.subr.bf16.mxu0 %v356
    %420 = vmatpush1.bf16.msra.mxu0 %v355
    %421 = vmatprep.subr.bf16.mxu0 %v358
    %422 = vmatpush1.bf16.msra.mxu0 %v357
    %423 = vmatprep.mubr.bf16.mxu0 %v186
    %424 = vmatmul.mubr.bf16.gmra.mrb[0].mxu0 %v185
    %v425 = vpop.f32.mrb[0].mxu0
    %v426 = vadd.f32 %v224, %v425
    %v427 = vpop.f32.mrb[0].mxu0
    %v428 = vadd.f32 %v228, %v427
    %v429 = vpop.f32.mrb[0].mxu0
    %v430 = vpop.f32.mrb[0].mxu0
    %431 = vdwg.mxu0
    %v432 = vmax.f32 %v426, 0.0
    %v433 = vmax.f32 %v428, 0.0
    %v434 = vld [vmem:[%s7] sm:$0x3]
    %v435 = vunpack.c.l.bf16 %v434
    %v437 = vlaneseq
    %v438 = vshrl.u32 %v437, 7
    %v439 = vsub.s32 0, %v438
    %v440 = vrot.slane %v435, %v439
    %v441 = vlaneseq
    %v442 = vshrl.u32 %v441, 7
    %v443 = vsub.s32 2, %v442
    %v444 = vrot.slane %v435, %v443
    %v447 = vlaneseq
    %v448 = vshrl.u32 %v447, 7
    %v449 = vsub.s32 0, %v448
    %v450 = vrot.slane %v440, %v449
    %v451 = vlaneseq
    %v452 = vshrl.u32 %v451, 7
    %v453 = vsub.s32 0, %v452
    %v454 = vrot.slane %v444, %v453
    %v455 = vmul.f32 %v432, %v450
    %v456 = vmul.f32 %v433, %v454
    %v457 = vadd.f32 %v455, %v456
    %458 = vadd.xlane.f32.xlu0 %v457
    %v459 = vpop.xlane.xlu0 %458
    %s460 = sld [smem:[#allocation2]]
    %v461 = vstv %s460
    %v462 = vadd.f32 %v459, %v461
    %vm463 = vcmask 7168
    %464 = vst.msk [vmem:[%s9] sm:$0xff] %vm463, %v462
    // Predicated region
    $region42: #{q_forward.1} parent=1 // pred_check
      _
    $region43: #{q_forward.1} parent=1 // pred_check_branch
      %466 = sbr.rel (0) target = $region45
    $region44: #{q_forward.1} parent=1 // pred_region
      _
    $region45: #{q_forward.1} parent=1 // pred_fallthru
      _
    // Predicated region
    $region46: #{q_forward.1} parent=1 // pred_check
      _
    $region47: #{q_forward.1} parent=1 // pred_check_branch
      %468 = sbr.rel (0) target = $region49
    $region48: #{q_forward.1} parent=1 // pred_region
      _
    $region49: #{q_forward.1} parent=1 // pred_fallthru
      _
    %469 = vsyncpa [#allocation4], 1

</llo_original>
